<compile_context>
chip_gen: v5e
topology: v5e:2x2
jax: 0.10.0
libtpu: 0.0.40
codegen_flags: <defaults>
</compile_context>

<pallas_src>
import functools
import math

import jax
import jax.numpy as jnp
from jax import lax
from jax.experimental import pallas as pl
from jax.experimental.pallas import tpu as pltpu

NUM_SCENES = 365
NUM_PLACES = 3


def make_params(key, in_ch=3, feat=128):
    """Synthetic conv-stem + FC backbone params + places365 -> places3 hierarchy."""
    k1, k2, k3, k4, k5 = jax.random.split(key, 5)
    wconv = jax.random.normal(k1, (3, 3, in_ch, feat), jnp.float32) / math.sqrt(9 * in_ch)
    bconv = jax.random.normal(k2, (1, feat), jnp.float32) * 0.1
    wfc = jax.random.normal(k3, (feat, NUM_SCENES), jnp.float32) / math.sqrt(feat)
    bfc = jax.random.normal(k4, (1, NUM_SCENES), jnp.float32) * 0.1
    # hierarchy_places3: positive entries, rows normalized to sum to 1 (as in the module)
    hier3 = jax.random.uniform(k5, (NUM_SCENES, NUM_PLACES), jnp.float32,
                               minval=0.05, maxval=1.0)
    hier3 = hier3 / jnp.sum(hier3, axis=1, keepdims=True)
    return (wconv, bconv, wfc, bfc, hier3)


def _pick_group(W, K0):
    """Largest G with G | W, (W // G) % 8 == 0 (8-aligned dy row shifts) and G*K0 <= 128."""
    G = 1
    for g in range(2, W + 1):
        if W % g == 0 and (W // g) % 8 == 0 and g * K0 <= 128:
            G = g
    return G


def _conv_gap_kernel(x_ref, w_ref, b_ref, out_ref, *, Wg, M, cr, n_chunks,
                     rows_per_split, GF, unroll):
    """One grid step: 3x3 conv (dy taps = 3 row-shifted matmuls) + bias + ReLU +
    spatial sum for `rows_per_split` output rows of one image.  Output: (1, GF) sums."""
    s = pl.program_id(1)
    y_base = s * rows_per_split
    ones_row = jnp.ones((1, M), jnp.float32)          # hoisted out of the chunk loop

    def chunk(i, carry):
        y0 = y_base + i * cr
        pre = jnp.zeros((M, GF), jnp.float32)
        for dy in range(3):                           # vertical taps: row-shifted matmuls
            start = pl.multiple_of((y0 + dy) * Wg, 8)
            xs = x_ref[0, pl.ds(start, M), :]         # (M, K) bf16
            pre = pre + jnp.dot(xs, w_ref[dy], preferred_element_type=jnp.float32)
        act = jnp.maximum(pre + b_ref[...], 0.0)      # bias + ReLU in f32
        # partial global-average-pool sum on the MXU (ones-row matmul, not sublane sum)
        return carry + jnp.dot(ones_row, act, preferred_element_type=jnp.float32)

    total = lax.fori_loop(0, n_chunks, chunk, jnp.zeros((1, GF), jnp.float32),
                          unroll=unroll)
    out_ref[...] = jnp.broadcast_to(total, out_ref.shape)   # lane-dense (1,1,8,GF) block


@jax.jit
def scene_classifier_forward(x_nchw, params):
    """x_nchw: (B, C, H, W) f32 -> int32 place labels (B,) (0 indoor /1 natural /2 urban)."""
    wconv, bconv, wfc, bfc, hier3 = params
    B, C, H, W = x_nchw.shape
    F = wconv.shape[-1]
    assert W % 8 == 0, W

    K0 = 3 * C                        # per-pixel contraction of the horizontal taps
    G = _pick_group(W, K0)            # output pixels packed per matmul row
    Wg = W // G                       # matmul rows per image row (multiple of 8)
    K = G * K0                        # streamed-operand lane width (126 @ 224x224, C=3)
    GF = G * F                        # packed feature width
    R = (H + 2) * Wg                  # streamed rows per image (incl. vertical zero pad)

    S = 2 if (B == 1 and H % 2 == 0) else 1   # feed both v7x TensorCores at B == 1
    rows_per_split = H // S
    cr = min(rows_per_split, max(1, 256 // Wg))   # output image rows per in-kernel chunk
    while rows_per_split % cr:
        cr -= 1
    M = cr * Wg
    n_chunks = rows_per_split // cr
    unroll = bool(n_chunks <= 8)

    # ---- host-side glue: dx taps packed into channels (3x raw input, not 9x) ----
    xh = jnp.transpose(x_nchw, (0, 2, 3, 1))                    # NHWC
    xp = jnp.pad(xh, ((0, 0), (1, 1), (1, 1), (0, 0)))          # zero pad H, W by 1
    xw = jnp.concatenate([xp[:, :, d:d + W, :] for d in range(3)], axis=-1)  # (B,H+2,W,3C)
    x_pk = xw.reshape(B, H + 2, Wg, K).reshape(B, R, K).astype(jnp.bfloat16)

    # block-diagonal conv weights: one (K, GF) matrix per vertical tap dy
    w_taps = wconv.reshape(3, K0, F)
    eye_g = jnp.eye(G, dtype=wconv.dtype)
    w_pk = jnp.einsum('gh,dkf->dgkhf', eye_g, w_taps).reshape(3, K, GF).astype(jnp.bfloat16)
    b_pk = jnp.tile(bconv, (1, G)).astype(jnp.float32)           # (1, GF)

    kernel = functools.partial(_conv_gap_kernel, Wg=Wg, M=M, cr=cr, n_chunks=n_chunks,
                               rows_per_split=rows_per_split, GF=GF, unroll=unroll)

    # explicit VMEM budget (v7x has 64 MiB physical -> cap at 48 MiB, never below default)
    est = (2 * R * K * 2) + (2 * 3 * K * GF * 2) + (2 * GF * 4) + (2 * 8 * GF * 4) \
        + 3 * (M * GF * 4)
    vmem_limit = int(min(48 * 2 ** 20, max(32 * 2 ** 20, 2 * est)))

    flops = 2 * B * (H * Wg) * K * GF * 3 + 2 * B * (H * Wg) * GF
    bytes_accessed = (x_pk.size * 2 + w_pk.size * 2 + b_pk.size * 4
                      + B * S * 8 * GF * 4)

    sums = pl.pallas_call(
        kernel,
        out_shape=jax.ShapeDtypeStruct((B, S, 8, GF), jnp.float32),
        grid=(B, S),
        in_specs=[
            pl.BlockSpec((1, R, K), lambda b, s: (b, 0, 0)),      # whole padded image
            pl.BlockSpec((3, K, GF), lambda b, s: (0, 0, 0)),     # conv weights (resident)
            pl.BlockSpec((1, GF), lambda b, s: (0, 0)),           # bias
        ],
        out_specs=pl.BlockSpec((1, 1, 8, GF), lambda b, s: (b, s, 0, 0)),
        compiler_params=pltpu.CompilerParams(
            dimension_semantics=("parallel", "parallel"),
            vmem_limit_bytes=vmem_limit),
        cost_estimate=pl.CostEstimate(flops=int(flops), transcendentals=0,
                                      bytes_accessed=int(bytes_accessed)),
    )(x_pk, w_pk, b_pk)

    # ---- tiny head in plain XLA (per review: moved out of the kernel) ----
    packed = jnp.sum(sums[:, :, 0, :], axis=1)                       # (B, GF), sum splits
    pooled = packed.reshape(B, G, F).sum(axis=1) * (1.0 / (H * W))   # global average pool
    logits = pooled @ wfc + bfc                                      # (B, 365) scene logits
    places = logits @ hier3                                          # (B, 3)
    return jnp.argmax(places, axis=1).astype(jnp.int32)


def reference_forward(x_nchw, params):
    """Pure-JAX reference: conv -> bias/ReLU -> GAP -> FC(365) -> hierarchy -> argmax."""
    wconv, bconv, wfc, bfc, hier3 = params
    xh = jnp.transpose(x_nchw, (0, 2, 3, 1)).astype(jnp.bfloat16)
    feat = lax.conv_general_dilated(
        xh, wconv.astype(jnp.bfloat16), window_strides=(1, 1), padding='SAME',
        dimension_numbers=('NHWC', 'HWIO', 'NHWC'),
        preferred_element_type=jnp.float32)
    feat = jnp.maximum(feat + bconv.reshape(1, 1, 1, -1), 0.0)
    pooled = jnp.mean(feat, axis=(1, 2))
    logits = pooled @ wfc + bfc
    places = logits @ hier3
    return jnp.argmax(places, axis=1).astype(jnp.int32)


if __name__ == "__main__":
    root = jax.random.PRNGKey(0)
    kparam, kdata = jax.random.split(root)
    params = make_params(kparam, in_ch=3, feat=128)

    # small shapes; the three configs exercise G=2 / split=2 / multi-chunk paths
    for i, (Bt, Ht, Wt) in enumerate([(2, 16, 16), (1, 32, 32), (2, 64, 64)]):
        kdata, sub = jax.random.split(kdata)
        x = jax.random.normal(sub, (Bt, 3, Ht, Wt), jnp.float32)

        labels = jax.block_until_ready(scene_classifier_forward(x, params))
        ref = reference_forward(x, params)

        assert labels.shape == (Bt,) and labels.dtype == jnp.int32, labels
        assert bool(jnp.all(labels == ref)), (i, labels, ref)

    print("KERNEL_OK")
</pallas_src>

<mosaic_0001>
module attributes {stable_mosaic.version = 11 : i64} {
  func.func @_conv_gap_kernel(%arg0: i32, %arg1: i32, %arg2: memref<1x144x18xbf16, #tpu.memory_space<vmem>>, %arg3: memref<3x18x256xbf16, #tpu.memory_space<vmem>>, %arg4: memref<1x256xf32, #tpu.memory_space<vmem>>, %arg5: memref<1x1x8x256xf32, #tpu.memory_space<vmem>>) attributes {dimension_semantics = [#tpu.dimension_semantics<parallel>, #tpu.dimension_semantics<parallel>], iteration_bounds = array<i64: 2, 1>, scalar_prefetch = 0 : i64, scratch_operands = 0 : i64, tpu.core_type = #tpu.core_type<tc>, window_params = [{transform_indices = @transform_0, window_bounds = array<i64: 1, 144, 18>}, {pipeline_mode = #tpu.pipeline_mode<synchronous>, transform_indices = @transform_1, window_bounds = array<i64: 3, 18, 256>}, {pipeline_mode = #tpu.pipeline_mode<synchronous>, transform_indices = @transform_2, window_bounds = array<i64: 1, 256>}, {transform_indices = @transform_3, window_bounds = array<i64: 1, 1, 8, 256>}]} {
    %c16_i32 = arith.constant 16 : i32
    %0 = arith.muli %arg1, %c16_i32 : i32
    %cst = arith.constant 1.000000e+00 : f32
    %1 = vector.broadcast %cst : f32 to vector<1x128xf32>
    %cst_0 = arith.constant 0.000000e+00 : f32
    %2 = vector.broadcast %cst_0 : f32 to vector<1x256xf32>
    %c0_i32 = arith.constant 0 : i32
    %c16_i32_1 = arith.constant 16 : i32
    %3 = arith.muli %c0_i32, %c16_i32_1 : i32
    %4 = arith.addi %0, %3 : i32
    %cst_2 = arith.constant 0.000000e+00 : f32
    %5 = vector.broadcast %cst_2 : f32 to vector<128x256xf32>
    %c0_i32_3 = arith.constant 0 : i32
    %6 = arith.addi %4, %c0_i32_3 : i32
    %c8_i32 = arith.constant 8 : i32
    %7 = arith.muli %6, %c8_i32 : i32
    %8 = tpu.assume_multiple %7, 8 : i32
    %c0 = arith.constant 0 : index
    %9 = arith.index_cast %8 : i32 to index
    %c0_4 = arith.constant 0 : index
    %10 = vector.load %arg2[%c0, %9, %c0_4] : memref<1x144x18xbf16, #tpu.memory_space<vmem>>, vector<1x128x18xbf16>
    %11 = vector.shape_cast %10 : vector<1x128x18xbf16> to vector<128x18xbf16>
    %c0_5 = arith.constant 0 : index
    %c0_6 = arith.constant 0 : index
    %c0_7 = arith.constant 0 : index
    %12 = vector.load %arg3[%c0_5, %c0_6, %c0_7] : memref<3x18x256xbf16, #tpu.memory_space<vmem>>, vector<1x18x256xbf16>
    %13 = vector.shape_cast %12 : vector<1x18x256xbf16> to vector<18x256xbf16>
    %cst_8 = arith.constant dense<0.000000e+00> : vector<128x256xf32>
    %14 = tpu.matmul %11, %13, %cst_8 {dimension_numbers = #tpu.dot_dimension_numbers<[1], [0], [0], [1], [0, 0, 1, 1], [], []>} : vector<128x18xbf16>, vector<18x256xbf16>, vector<128x256xf32> -> vector<128x256xf32>
    %15 = arith.addf %5, %14 : vector<128x256xf32>
    %c1_i32 = arith.constant 1 : i32
    %16 = arith.addi %4, %c1_i32 : i32
    %c8_i32_9 = arith.constant 8 : i32
    %17 = arith.muli %16, %c8_i32_9 : i32
    %18 = tpu.assume_multiple %17, 8 : i32
    %c0_10 = arith.constant 0 : index
    %19 = arith.index_cast %18 : i32 to index
    %c0_11 = arith.constant 0 : index
    %20 = vector.load %arg2[%c0_10, %19, %c0_11] : memref<1x144x18xbf16, #tpu.memory_space<vmem>>, vector<1x128x18xbf16>
    %21 = vector.shape_cast %20 : vector<1x128x18xbf16> to vector<128x18xbf16>
    %c1 = arith.constant 1 : index
    %c0_12 = arith.constant 0 : index
    %c0_13 = arith.constant 0 : index
    %22 = vector.load %arg3[%c1, %c0_12, %c0_13] : memref<3x18x256xbf16, #tpu.memory_space<vmem>>, vector<1x18x256xbf16>
    %23 = vector.shape_cast %22 : vector<1x18x256xbf16> to vector<18x256xbf16>
    %cst_14 = arith.constant dense<0.000000e+00> : vector<128x256xf32>
    %24 = tpu.matmul %21, %23, %cst_14 {dimension_numbers = #tpu.dot_dimension_numbers<[1], [0], [0], [1], [0, 0, 1, 1], [], []>} : vector<128x18xbf16>, vector<18x256xbf16>, vector<128x256xf32> -> vector<128x256xf32>
    %25 = arith.addf %15, %24 : vector<128x256xf32>
    %c2_i32 = arith.constant 2 : i32
    %26 = arith.addi %4, %c2_i32 : i32
    %c8_i32_15 = arith.constant 8 : i32
    %27 = arith.muli %26, %c8_i32_15 : i32
    %28 = tpu.assume_multiple %27, 8 : i32
    %c0_16 = arith.constant 0 : index
    %29 = arith.index_cast %28 : i32 to index
    %c0_17 = arith.constant 0 : index
    %30 = vector.load %arg2[%c0_16, %29, %c0_17] : memref<1x144x18xbf16, #tpu.memory_space<vmem>>, vector<1x128x18xbf16>
    %31 = vector.shape_cast %30 : vector<1x128x18xbf16> to vector<128x18xbf16>
    %c2 = arith.constant 2 : index
    %c0_18 = arith.constant 0 : index
    %c0_19 = arith.constant 0 : index
    %32 = vector.load %arg3[%c2, %c0_18, %c0_19] : memref<3x18x256xbf16, #tpu.memory_space<vmem>>, vector<1x18x256xbf16>
    %33 = vector.shape_cast %32 : vector<1x18x256xbf16> to vector<18x256xbf16>
    %cst_20 = arith.constant dense<0.000000e+00> : vector<128x256xf32>
    %34 = tpu.matmul %31, %33, %cst_20 {dimension_numbers = #tpu.dot_dimension_numbers<[1], [0], [0], [1], [0, 0, 1, 1], [], []>} : vector<128x18xbf16>, vector<18x256xbf16>, vector<128x256xf32> -> vector<128x256xf32>
    %35 = arith.addf %25, %34 : vector<128x256xf32>
    %c0_21 = arith.constant 0 : index
    %c0_22 = arith.constant 0 : index
    %36 = vector.load %arg4[%c0_21, %c0_22] : memref<1x256xf32, #tpu.memory_space<vmem>>, vector<1x256xf32>
    %37 = vector.broadcast %36 : vector<1x256xf32> to vector<128x256xf32>
    %38 = arith.addf %35, %37 : vector<128x256xf32>
    %cst_23 = arith.constant 0.000000e+00 : f32
    %39 = vector.broadcast %cst_23 : f32 to vector<128x256xf32>
    %40 = arith.maximumf %38, %39 : vector<128x256xf32>
    %cst_24 = arith.constant dense<0.000000e+00> : vector<1x256xf32>
    %41 = tpu.matmul %1, %40, %cst_24 {dimension_numbers = #tpu.dot_dimension_numbers<[1], [0], [0], [1], [0, 0, 1, 1], [], []>} : vector<1x128xf32>, vector<128x256xf32>, vector<1x256xf32> -> vector<1x256xf32>
    %42 = arith.addf %2, %41 : vector<1x256xf32>
    %c1_i32_25 = arith.constant 1 : i32
    %43 = vector.shape_cast %42 : vector<1x256xf32> to vector<1x1x1x256xf32>
    %44 = vector.broadcast %43 : vector<1x1x1x256xf32> to vector<1x1x8x256xf32>
    %c0_26 = arith.constant 0 : index
    %c0_27 = arith.constant 0 : index
    %c0_28 = arith.constant 0 : index
    %c0_29 = arith.constant 0 : index
    %45 = vector.load %arg5[%c0_26, %c0_27, %c0_28, %c0_29] : memref<1x1x8x256xf32, #tpu.memory_space<vmem>>, vector<1x1x8x256xf32>
    tpu.vector_store %arg5[%c0_26, %c0_27, %c0_28, %c0_29], %44 {strides = array<i32>} : memref<1x1x8x256xf32, #tpu.memory_space<vmem>>, vector<1x1x8x256xf32>,
    return
  }
  func.func @transform_0(%arg0: i32, %arg1: i32) -> (i32, i32, i32) {
    %c0_i32 = arith.constant 0 : i32
    %c0_i32_0 = arith.constant 0 : i32
    %c0_i32_1 = arith.constant 0 : i32
    return %arg0, %c0_i32, %c0_i32_0 : i32, i32, i32
  }
  func.func @transform_1(%arg0: i32, %arg1: i32) -> (i32, i32, i32) {
    %c0_i32 = arith.constant 0 : i32
    %c0_i32_0 = arith.constant 0 : i32
    %c0_i32_1 = arith.constant 0 : i32
    %c0_i32_2 = arith.constant 0 : i32
    return %c0_i32, %c0_i32_0, %c0_i32_1 : i32, i32, i32
  }
  func.func @transform_2(%arg0: i32, %arg1: i32) -> (i32, i32) {
    %c0_i32 = arith.constant 0 : i32
    %c0_i32_0 = arith.constant 0 : i32
    %c0_i32_1 = arith.constant 0 : i32
    return %c0_i32, %c0_i32_0 : i32, i32
  }
  func.func @transform_3(%arg0: i32, %arg1: i32) -> (i32, i32, i32, i32) {
    %c0_i32 = arith.constant 0 : i32
    %c0_i32_0 = arith.constant 0 : i32
    %c0_i32_1 = arith.constant 0 : i32
    return %arg0, %arg1, %c0_i32, %c0_i32_0 : i32, i32, i32, i32
  }
}

</mosaic_0001>

<llo_original>
// kernel: scene_classifier_forward.1
$region0: #{scene_classifier_forward.1}
  #allocation0 [shape = 'u32[]', space=smem, size = 0x4, offset = 0x4, fixed_abs, tag = 'smem constant byte address 0x4 - core index']
  #allocation1 [shape = 'u32[72,128]{1,0:T(1,128)}', space=vmem, size = 0x9000, scoped, tag = 'internal scratch']
  %s0 = inlined_call_operand.vmem [shape: bf16[2,144,18], index: 0, kind: input, shape index: {}]
  %s1 = inlined_call_operand.vmem [shape: bf16[3,18,256], index: 1, kind: input, shape index: {}]
  %s2 = inlined_call_operand.vmem [shape: f32[1,256], index: 2, kind: input, shape index: {}]
  %s3 = inlined_call_operand.vmem [shape: f32[2,1,8,256], index: 3, kind: output, shape index: {}]
  %s4 = sld [smem:[#allocation0]]
  $region45: #{scene_classifier_forward.1} parent=0
    _
  %s6 = ssub.s32 1, %s4
  %s7 = scalar_select 0, %s6, %s4
  loop: start=0, step=1, limit=4
  $region2: #{scene_classifier_forward.1} parent=0 // loop_pre_header
    _
  $region3: #{scene_classifier_forward.1} parent=0 // loop_header
    %s9 = sphi 0, %s13
    %p10 = scmp.ge.s32.totalorder %s9, 4
    %s16 = sphi 0, %s28
    %s17 = sphi 0, %s24
    %s18 = sphi 0, %s16
    %s19 = sphi 0, %s17
    %s20 = sphi 0, %s18
    %s21 = sphi 0, %s19
    %s31 = sphi 0, %s33
    %s34 = sphi 0, %s31
    %s35 = sphi 0, %s34
    %s51 = sphi 0, %s35
    %s55 = sphi 0, %s55
    %s57 = sphi 0, %s55
    %s58 = sphi 0, %s57
    %s72 = sphi 0, %s58
    %s76 = sphi 0, %s76
    %s78 = sphi 0, %s76
    %s79 = sphi 0, %s78
    %s93 = sphi 0, %s79
    %s101 = sphi 0, %s103
    %s104 = sphi 0, %s101
    %s105 = sphi 0, %s104
    %s121 = sphi 0, %s105
  $region4: #{scene_classifier_forward.1} parent=0 // loop_header_branch
    %12 = sbr.rel (%p10) target = $region8
  $region5: #{scene_classifier_forward.1} parent=0 // loop_body
    %s14 = ssub.s32 %s9, 1
    %s15 = ssub.s32 %s9, 2
    %s22 = sadd.s32 1, %s17
    %p23 = scmp.ge.s32.totalorder %s22, 1
    %s24 = scalar_select %p23, 0, %s22
    %s25 = sadd.s32 1, %s16
    %s26 = scalar_select %p23, %s25, %s16
    %p27 = scmp.ge.s32.totalorder %s26, 2
    %s28 = scalar_select %p27, 0, %s26
    %s29 = ssub.s32 %s16, %s28
    %p30 = scmp.eq.s32.totalorder %s29, 0
    %s32 = sadd.s32 %s31, 1
    %s33 = scalar_select %p30, %s31, %s32
    %p36 = pneg %p30
    %p37 = scmp.eq.s32.totalorder %s9, 1
    %p38 = por %p36, %p37
    %p39 = scmp.ne.s32.totalorder %s31, %s34
    %p40 = scmp.eq.s32.totalorder %s9, 0
    %p41 = por %p39, %p40
    %p42 = scmp.ne.s32.totalorder %s31, %s34
    %p43 = scmp.eq.s32.totalorder %s14, 1
    %p44 = por %p42, %p43
    %p45 = scmp.ne.s32.totalorder %s34, %s35
    %p46 = scmp.eq.s32.totalorder %s14, 0
    %p47 = por %p45, %p46
    %p48 = scmp.ne.s32.totalorder %s34, %s35
    %p49 = scmp.eq.s32.totalorder %s15, 1
    %p50 = por %p48, %p49
    %p52 = scmp.ne.s32.totalorder %s35, %s51
    %p53 = scmp.eq.s32.totalorder %s15, 0
    %p54 = por %p52, %p53
    %s56 = sadd.s32 %s55, 1
    %p59 = scmp.eq.s32.totalorder %s9, 1
    %p60 = scmp.ne.s32.totalorder %s55, %s57
    %p61 = scmp.eq.s32.totalorder %s9, 0
    %p62 = por %p60, %p61
    %p63 = scmp.ne.s32.totalorder %s55, %s57
    %p64 = scmp.eq.s32.totalorder %s14, 1
    %p65 = por %p63, %p64
    %p66 = scmp.ne.s32.totalorder %s57, %s58
    %p67 = scmp.eq.s32.totalorder %s14, 0
    %p68 = por %p66, %p67
    %p69 = scmp.ne.s32.totalorder %s57, %s58
    %p70 = scmp.eq.s32.totalorder %s15, 1
    %p71 = por %p69, %p70
    %p73 = scmp.ne.s32.totalorder %s58, %s72
    %p74 = scmp.eq.s32.totalorder %s15, 0
    %p75 = por %p73, %p74
    %s77 = sadd.s32 %s76, 1
    %p80 = scmp.eq.s32.totalorder %s9, 1
    %p81 = scmp.ne.s32.totalorder %s76, %s78
    %p82 = scmp.eq.s32.totalorder %s9, 0
    %p83 = por %p81, %p82
    %p84 = scmp.ne.s32.totalorder %s76, %s78
    %p85 = scmp.eq.s32.totalorder %s14, 1
    %p86 = por %p84, %p85
    %p87 = scmp.ne.s32.totalorder %s78, %s79
    %p88 = scmp.eq.s32.totalorder %s14, 0
    %p89 = por %p87, %p88
    %p90 = scmp.ne.s32.totalorder %s78, %s79
    %p91 = scmp.eq.s32.totalorder %s15, 1
    %p92 = por %p90, %p91
    %p94 = scmp.ne.s32.totalorder %s79, %s93
    %p95 = scmp.eq.s32.totalorder %s15, 0
    %p96 = por %p94, %p95
    %s97 = ssub.s32 %s16, %s28
    %s98 = ssub.s32 %s17, %s24
    %s99 = sor.u32 %s97, %s98
    %p100 = scmp.eq.s32.totalorder %s99, 0
    %s102 = sadd.s32 %s101, 1
    %s103 = scalar_select %p100, %s101, %s102
    %p106 = pneg %p100
    %p107 = scmp.eq.s32.totalorder %s9, 1
    %p108 = por %p106, %p107
    %p109 = scmp.ne.s32.totalorder %s101, %s104
    %p110 = scmp.eq.s32.totalorder %s9, 0
    %p111 = por %p109, %p110
    %p112 = scmp.ne.s32.totalorder %s101, %s104
    %p113 = scmp.eq.s32.totalorder %s14, 1
    %p114 = por %p112, %p113
    %p115 = scmp.ne.s32.totalorder %s104, %s105
    %p116 = scmp.eq.s32.totalorder %s14, 0
    %p117 = por %p115, %p116
    %p118 = scmp.ne.s32.totalorder %s104, %s105
    %p119 = scmp.eq.s32.totalorder %s15, 1
    %p120 = por %p118, %p119
    %p122 = scmp.ne.s32.totalorder %s105, %s121
    %p123 = scmp.eq.s32.totalorder %s15, 0
    %p124 = por %p122, %p123
    %p125 = scmp.le.s32.totalorder 1, %s9
    %p126 = scmp.lt.s32.totalorder %s9, 3
    %p127 = pnand %p125, %p126
    %p128 = pneg %p127
    // Predicated region
    $region9: #{scene_classifier_forward.1} parent=5 // pred_check
      _
    $region10: #{scene_classifier_forward.1} parent=5 // pred_check_branch
      %130 = sbr.rel (%p127) target = $region12
    $region11: #{scene_classifier_forward.1} parent=5 // pred_region
      %s131 = ssub.s32 %s9, 1
      // Predicated region
      $region13: #{scene_classifier_forward.1} parent=11 // pred_check
        %p132 = pneg %p68
      $region14: #{scene_classifier_forward.1} parent=11 // pred_check_branch
        %134 = sbr.rel (%p132) target = $region16
      $region15: #{scene_classifier_forward.1} parent=11 // pred_region
        _
      $region16: #{scene_classifier_forward.1} parent=11 // pred_fallthru
        _
      // Predicated region
      $region17: #{scene_classifier_forward.1} parent=11 // pred_check
        %p135 = pneg %p89
      $region18: #{scene_classifier_forward.1} parent=11 // pred_check_branch
        %137 = sbr.rel (%p135) target = $region20
      $region19: #{scene_classifier_forward.1} parent=11 // pred_region
        _
      $region20: #{scene_classifier_forward.1} parent=11 // pred_fallthru
        _
    $region12: #{scene_classifier_forward.1} parent=5 // pred_fallthru
      _
    %p138 = scmp.lt.s32.totalorder %s9, 2
    // Predicated region
    $region21: #{scene_classifier_forward.1} parent=5 // pred_check
      %p139 = pneg %p138
    $region22: #{scene_classifier_forward.1} parent=5 // pred_check_branch
      %141 = sbr.rel (%p139) target = $region24
    $region23: #{scene_classifier_forward.1} parent=5 // pred_region
      // Predicated region
      $region25: #{scene_classifier_forward.1} parent=23 // pred_check
        %p142 = pneg %p41
      $region26: #{scene_classifier_forward.1} parent=23 // pred_check_branch
        %144 = sbr.rel (%p142) target = $region28
      $region27: #{scene_classifier_forward.1} parent=23 // pred_region
        %p145 = scmp.lt.s32.totalorder %s16, 1
        %s146 = scalar_select %p145, %s16, 1
        %s147 = smul.addr %s146, 18
        %s148 = smul.addr %s147, 4
        %s149 = scalar_lea.vmem %s0, %s148
      $region28: #{scene_classifier_forward.1} parent=23 // pred_fallthru
        _
    $region24: #{scene_classifier_forward.1} parent=5 // pred_fallthru
      _
    %p150 = scmp.le.s32.totalorder 1, %s9
    %p151 = scmp.lt.s32.totalorder %s9, 3
    %p152 = pnand %p150, %p151
    %p153 = pneg %p152
    // Predicated region
    $region29: #{scene_classifier_forward.1} parent=5 // pred_check
      _
    $region30: #{scene_classifier_forward.1} parent=5 // pred_check_branch
      %155 = sbr.rel (%p152) target = $region32
    $region31: #{scene_classifier_forward.1} parent=5 // pred_region
      %s156 = ssub.s32 %s9, 1
      %p157 = scmp.lt.s32.totalorder %s18, 1
      %s158 = scalar_select %p157, %s18, 1
      %s159 = smul.addr %s158, 18
      %s160 = smul.addr %s159, 4
      %s161 = scalar_lea.vmem %s0, %s160
      %p162 = pneg %p47
      %p163 = pneg %p44
      %p164 = pneg %p68
      %p165 = pneg %p65
      %p166 = pneg %p89
      %p167 = pneg %p86
      %p168 = pneg %p117
      %p169 = pneg %p114
      %p170 = scmp.lt.s32.totalorder %s18, 1
      %s171 = scalar_select %p170, %s18, 1
      %p172 = scmp.lt.s32.totalorder %s19, 0
      %s173 = scalar_select %p172, %s19, 0
      %s174 = smul.addr %s173, 2
      %s175 = smul.addr %s171, 2
      %s176 = sadd.s32 %s174, %s175
      %s177 = smul.addr %s176, 8
      %s178 = scalar_lea.vmem %s3, %s177
      %p179 = scmp.lt.s32.totalorder %s18, 1
      %s180 = scalar_select %p179, %s18, 1
      %s181 = smul.addr %s180, 18
      %s182 = smul.addr %s181, 4
      %s183 = scalar_lea.vmem %s0, %s182
      %p184 = scmp.lt.s32.totalorder %s18, 1
      %s185 = scalar_select %p184, %s18, 1
      %p186 = scmp.lt.s32.totalorder %s19, 0
      %s187 = scalar_select %p186, %s19, 0
      %s188 = smul.addr %s187, 2
      %s189 = smul.addr %s185, 2
      %s190 = sadd.s32 %s188, %s189
      %s191 = smul.addr %s190, 8
      %s192 = scalar_lea.vmem %s3, %s191
      %s194 = smul.u32 %s19, 16
      %s195 = smul.u32 %s19, 128
      %s196 = sshra.s32 %s195, 3
      %s197 = sand.u32 %s195, 7
      %s198 = smul.addr %s196, 4
      %s199 = scalar_lea.vmem %s183, %s198
      %v200 = vld [vmem:[%s199] sm:$0xf]
      %v201 = vld [vmem:[%s199 + $0x4] sm:$0xf]
      %v202 = vld [vmem:[%s199 + $0x8] sm:$0xf]
      %v203 = vld [vmem:[%s199 + $0xc] sm:$0xf]
      %v204 = vld [vmem:[%s199 + $0x10] sm:$0xf]
      %v205 = vld [vmem:[%s199 + $0x14] sm:$0xf]
      %v206 = vld [vmem:[%s199 + $0x18] sm:$0xf]
      %v207 = vld [vmem:[%s199 + $0x1c] sm:$0xf]
      %v208 = vld [vmem:[%s199 + $0x20] sm:$0xf]
      %v209 = vld [vmem:[%s199 + $0x24] sm:$0xf]
      %v210 = vld [vmem:[%s199 + $0x28] sm:$0xf]
      %v211 = vld [vmem:[%s199 + $0x2c] sm:$0xf]
      %v212 = vld [vmem:[%s199 + $0x30] sm:$0xf]
      %v213 = vld [vmem:[%s199 + $0x34] sm:$0xf]
      %v214 = vld [vmem:[%s199 + $0x38] sm:$0xf]
      %v215 = vld [vmem:[%s199 + $0x3c] sm:$0xf]
      %v216 = vld [vmem:[%s1] sm:$0xff]
      %v217 = vld [vmem:[%s1 + $0x8] sm:$0xff]
      %v218 = vld [vmem:[%s1 + $0x10] sm:$0x11]
      %s219 = sadd.s32 %s194, 1
      %s220 = smul.u32 %s219, 8
      %s221 = sshra.s32 %s220, 3
      %s222 = sand.u32 %s220, 7
      %s223 = smul.addr %s221, 4
      %s224 = scalar_lea.vmem %s183, %s223
      %v225 = vld [vmem:[%s224] sm:$0xf]
      %v226 = vld [vmem:[%s224 + $0x4] sm:$0xf]
      %v227 = vld [vmem:[%s224 + $0x8] sm:$0xf]
      %v228 = vld [vmem:[%s224 + $0xc] sm:$0xf]
      %v229 = vld [vmem:[%s224 + $0x10] sm:$0xf]
      %v230 = vld [vmem:[%s224 + $0x14] sm:$0xf]
      %v231 = vld [vmem:[%s224 + $0x18] sm:$0xf]
      %v232 = vld [vmem:[%s224 + $0x1c] sm:$0xf]
      %v233 = vld [vmem:[%s224 + $0x20] sm:$0xf]
      %v234 = vld [vmem:[%s224 + $0x24] sm:$0xf]
      %v235 = vld [vmem:[%s224 + $0x28] sm:$0xf]
      %v236 = vld [vmem:[%s224 + $0x2c] sm:$0xf]
      %v237 = vld [vmem:[%s224 + $0x30] sm:$0xf]
      %v238 = vld [vmem:[%s224 + $0x34] sm:$0xf]
      %v239 = vld [vmem:[%s224 + $0x38] sm:$0xf]
      %v240 = vld [vmem:[%s224 + $0x3c] sm:$0xf]
      %s241 = scalar_lea.vmem %s1, 24
      %v242 = vld [vmem:[%s241] sm:$0xff]
      %v243 = vld [vmem:[%s241 + $0x8] sm:$0xff]
      %v244 = vld [vmem:[%s241 + $0x10] sm:$0x11]
      %v261 = vunpack.c.l.b16 %v225
      %v262 = vunpack.c.l.b16 %v226
      %v263 = vunpack.c.l.b16 %v227
      %v264 = vunpack.c.l.b16 %v228
      %v265 = vunpack.c.l.b16 %v229
      %v266 = vunpack.c.l.b16 %v230
      %v267 = vunpack.c.l.b16 %v231
      %v268 = vunpack.c.l.b16 %v232
      %v269 = vunpack.c.l.b16 %v233
      %v270 = vunpack.c.l.b16 %v234
      %v271 = vunpack.c.l.b16 %v235
      %v272 = vunpack.c.l.b16 %v236
      %v273 = vunpack.c.l.b16 %v237
      %v274 = vunpack.c.l.b16 %v238
      %v275 = vunpack.c.l.b16 %v239
      %v276 = vunpack.c.l.b16 %v240
      %v277 = vpack.c.b16 %v262, %v261
      %v278 = vpack.c.b16 %v264, %v263
      %v279 = vpack.c.b16 %v266, %v265
      %v280 = vpack.c.b16 %v268, %v267
      %v281 = vpack.c.b16 %v270, %v269
      %v282 = vpack.c.b16 %v272, %v271
      %v283 = vpack.c.b16 %v274, %v273
      %v284 = vpack.c.b16 %v276, %v275
      %v288 = vunpack.c.l.b16 %v242
      %v289 = vunpack.c.h.b16 %v242
      %v290 = vunpack.c.l.b16 %v243
      %v291 = vunpack.c.h.b16 %v243
      %v292 = vunpack.c.l.b16 %v244
      %v293 = vunpack.c.h.b16 %v244
      %v294 = vpack.c.b16 %v290, %v288
      %v295 = vpack.c.b16 %v291, %v289
      %v296 = vpack.c.b16 %v292, %v292
      %v297 = vpack.c.b16 %v293, %v293
      %vm300 = vcmask 146432
      %v302 = vsel %vm300, %v277, 0
      %v305 = vsel %vm300, %v278, 0
      %v308 = vsel %vm300, %v279, 0
      %v311 = vsel %vm300, %v280, 0
      %v314 = vsel %vm300, %v281, 0
      %v317 = vsel %vm300, %v282, 0
      %v320 = vsel %vm300, %v283, 0
      %v323 = vsel %vm300, %v284, 0
      %vm325 = vcmask 1040384
      %v327 = vsel %vm325, %v296, 0
      %v330 = vsel %vm325, %v297, 0
      %332 = vmatpush.bf16.msra.mxu0 0
      %333 = vmatpush.bf16.msra.mxu0 0
      %334 = vmatpush.bf16.msra.mxu0 0
      %335 = vmatpush.bf16.msra.mxu0 0
      %336 = vmatpush.bf16.msra.mxu0 0
      %337 = vmatpush.bf16.msra.mxu0 0
      %338 = vmatpush.bf16.msra.mxu0 %v327
      %339 = vmatpush.bf16.msra.mxu0 %v294
      %340 = vmatmul.bf16.gmra.mxu0 %v302
      %v341 = vpop.f32.mrf.mxu0
      %v342 = vadd.f32 0.0, %v341
      %v343 = vpop.f32.mrf.mxu0
      %v344 = vadd.f32 0.0, %v343
      %345 = vmatmul.bf16.gmra.mxu0 %v305
      %v346 = vpop.f32.mrf.mxu0
      %v347 = vadd.f32 0.0, %v346
      %v348 = vpop.f32.mrf.mxu0
      %v349 = vadd.f32 0.0, %v348
      %350 = vmatmul.bf16.gmra.mxu0 %v308
      %v351 = vpop.f32.mrf.mxu0
      %v352 = vadd.f32 0.0, %v351
      %v353 = vpop.f32.mrf.mxu0
      %v354 = vadd.f32 0.0, %v353
      %355 = vmatmul.bf16.gmra.mxu0 %v311
      %v356 = vpop.f32.mrf.mxu0
      %v357 = vadd.f32 0.0, %v356
      %v358 = vpop.f32.mrf.mxu0
      %v359 = vadd.f32 0.0, %v358
      %360 = vmatmul.bf16.gmra.mxu0 %v314
      %v361 = vpop.f32.mrf.mxu0
      %v362 = vadd.f32 0.0, %v361
      %v363 = vpop.f32.mrf.mxu0
      %v364 = vadd.f32 0.0, %v363
      %365 = vmatmul.bf16.gmra.mxu0 %v317
      %v366 = vpop.f32.mrf.mxu0
      %v367 = vadd.f32 0.0, %v366
      %v368 = vpop.f32.mrf.mxu0
      %v369 = vadd.f32 0.0, %v368
      %370 = vmatmul.bf16.gmra.mxu0 %v320
      %v371 = vpop.f32.mrf.mxu0
      %v372 = vadd.f32 0.0, %v371
      %v373 = vpop.f32.mrf.mxu0
      %v374 = vadd.f32 0.0, %v373
      %375 = vmatmul.bf16.gmra.mxu0 %v323
      %v376 = vpop.f32.mrf.mxu0
      %v377 = vadd.f32 0.0, %v376
      %v378 = vpop.f32.mrf.mxu0
      %v379 = vadd.f32 0.0, %v378
      %380 = vdwg.mxu0
      %381 = vmatpush.bf16.msra.mxu0 0
      %382 = vmatpush.bf16.msra.mxu0 0
      %383 = vmatpush.bf16.msra.mxu0 0
      %384 = vmatpush.bf16.msra.mxu0 0
      %385 = vmatpush.bf16.msra.mxu0 0
      %386 = vmatpush.bf16.msra.mxu0 0
      %387 = vmatpush.bf16.msra.mxu0 %v330
      %388 = vmatpush.bf16.msra.mxu0 %v295
      %389 = vmatmul.bf16.gmra.mxu0 %v302
      %v390 = vpop.f32.mrf.mxu0
      %v391 = vadd.f32 0.0, %v390
      %v392 = vpop.f32.mrf.mxu0
      %v393 = vadd.f32 0.0, %v392
      %394 = vmatmul.bf16.gmra.mxu0 %v305
      %v395 = vpop.f32.mrf.mxu0
      %v396 = vadd.f32 0.0, %v395
      %v397 = vpop.f32.mrf.mxu0
      %v398 = vadd.f32 0.0, %v397
      %399 = vmatmul.bf16.gmra.mxu0 %v308
      %v400 = vpop.f32.mrf.mxu0
      %v401 = vadd.f32 0.0, %v400
      %v402 = vpop.f32.mrf.mxu0
      %v403 = vadd.f32 0.0, %v402
      %404 = vmatmul.bf16.gmra.mxu0 %v311
      %v405 = vpop.f32.mrf.mxu0
      %v406 = vadd.f32 0.0, %v405
      %v407 = vpop.f32.mrf.mxu0
      %v408 = vadd.f32 0.0, %v407
      %409 = vmatmul.bf16.gmra.mxu0 %v314
      %v410 = vpop.f32.mrf.mxu0
      %v411 = vadd.f32 0.0, %v410
      %v412 = vpop.f32.mrf.mxu0
      %v413 = vadd.f32 0.0, %v412
      %414 = vmatmul.bf16.gmra.mxu0 %v317
      %v415 = vpop.f32.mrf.mxu0
      %v416 = vadd.f32 0.0, %v415
      %v417 = vpop.f32.mrf.mxu0
      %v418 = vadd.f32 0.0, %v417
      %419 = vmatmul.bf16.gmra.mxu0 %v320
      %v420 = vpop.f32.mrf.mxu0
      %v421 = vadd.f32 0.0, %v420
      %v422 = vpop.f32.mrf.mxu0
      %v423 = vadd.f32 0.0, %v422
      %424 = vmatmul.bf16.gmra.mxu0 %v323
      %v425 = vpop.f32.mrf.mxu0
      %v426 = vadd.f32 0.0, %v425
      %v427 = vpop.f32.mrf.mxu0
      %v428 = vadd.f32 0.0, %v427
      %429 = vdwg.mxu0
      %v446 = vunpack.c.l.b16 %v200
      %v447 = vunpack.c.l.b16 %v201
      %v448 = vunpack.c.l.b16 %v202
      %v449 = vunpack.c.l.b16 %v203
      %v450 = vunpack.c.l.b16 %v204
      %v451 = vunpack.c.l.b16 %v205
      %v452 = vunpack.c.l.b16 %v206
      %v453 = vunpack.c.l.b16 %v207
      %v454 = vunpack.c.l.b16 %v208
      %v455 = vunpack.c.l.b16 %v209
      %v456 = vunpack.c.l.b16 %v210
      %v457 = vunpack.c.l.b16 %v211
      %v458 = vunpack.c.l.b16 %v212
      %v459 = vunpack.c.l.b16 %v213
      %v460 = vunpack.c.l.b16 %v214
      %v461 = vunpack.c.l.b16 %v215
      %v462 = vpack.c.b16 %v447, %v446
      %v463 = vpack.c.b16 %v449, %v448
      %v464 = vpack.c.b16 %v451, %v450
      %v465 = vpack.c.b16 %v453, %v452
      %v466 = vpack.c.b16 %v455, %v454
      %v467 = vpack.c.b16 %v457, %v456
      %v468 = vpack.c.b16 %v459, %v458
      %v469 = vpack.c.b16 %v461, %v460
      %v473 = vunpack.c.l.b16 %v216
      %v474 = vunpack.c.h.b16 %v216
      %v475 = vunpack.c.l.b16 %v217
      %v476 = vunpack.c.h.b16 %v217
      %v477 = vunpack.c.l.b16 %v218
      %v478 = vunpack.c.h.b16 %v218
      %v479 = vpack.c.b16 %v475, %v473
      %v480 = vpack.c.b16 %v476, %v474
      %v481 = vpack.c.b16 %v477, %v477
      %v482 = vpack.c.b16 %v478, %v478
      %v486 = vsel %vm300, %v462, 0
      %v489 = vsel %vm300, %v463, 0
      %v492 = vsel %vm300, %v464, 0
      %v495 = vsel %vm300, %v465, 0
      %v498 = vsel %vm300, %v466, 0
      %v501 = vsel %vm300, %v467, 0
      %v504 = vsel %vm300, %v468, 0
      %v507 = vsel %vm300, %v469, 0
      %v510 = vsel %vm325, %v481, 0
      %v513 = vsel %vm325, %v482, 0
      %515 = vmatpush.bf16.msra.mxu0 0
      %516 = vmatpush.bf16.msra.mxu0 0
      %517 = vmatpush.bf16.msra.mxu0 0
      %518 = vmatpush.bf16.msra.mxu0 0
      %519 = vmatpush.bf16.msra.mxu0 0
      %520 = vmatpush.bf16.msra.mxu0 0
      %521 = vmatpush.bf16.msra.mxu0 %v510
      %522 = vmatpush.bf16.msra.mxu0 %v479
      %523 = vmatmul.bf16.gmra.mxu0 %v486
      %v524 = vpop.f32.mrf.mxu0
      %v525 = vadd.f32 %v342, %v524
      %v526 = vpop.f32.mrf.mxu0
      %v527 = vadd.f32 %v344, %v526
      %528 = vmatmul.bf16.gmra.mxu0 %v489
      %v529 = vpop.f32.mrf.mxu0
      %v530 = vadd.f32 %v347, %v529
      %v531 = vpop.f32.mrf.mxu0
      %v532 = vadd.f32 %v349, %v531
      %533 = vmatmul.bf16.gmra.mxu0 %v492
      %v534 = vpop.f32.mrf.mxu0
      %v535 = vadd.f32 %v352, %v534
      %v536 = vpop.f32.mrf.mxu0
      %v537 = vadd.f32 %v354, %v536
      %538 = vmatmul.bf16.gmra.mxu0 %v495
      %v539 = vpop.f32.mrf.mxu0
      %v540 = vadd.f32 %v357, %v539
      %v541 = vpop.f32.mrf.mxu0
      %v542 = vadd.f32 %v359, %v541
      %543 = vmatmul.bf16.gmra.mxu0 %v498
      %v544 = vpop.f32.mrf.mxu0
      %v545 = vadd.f32 %v362, %v544
      %v546 = vpop.f32.mrf.mxu0
      %v547 = vadd.f32 %v364, %v546
      %548 = vmatmul.bf16.gmra.mxu0 %v501
      %v549 = vpop.f32.mrf.mxu0
      %v550 = vadd.f32 %v367, %v549
      %v551 = vpop.f32.mrf.mxu0
      %v552 = vadd.f32 %v369, %v551
      %553 = vmatmul.bf16.gmra.mxu0 %v504
      %v554 = vpop.f32.mrf.mxu0
      %v555 = vadd.f32 %v372, %v554
      %v556 = vpop.f32.mrf.mxu0
      %v557 = vadd.f32 %v374, %v556
      %558 = vmatmul.bf16.gmra.mxu0 %v507
      %v559 = vpop.f32.mrf.mxu0
      %v560 = vadd.f32 %v377, %v559
      %v561 = vpop.f32.mrf.mxu0
      %v562 = vadd.f32 %v379, %v561
      %563 = vdwg.mxu0
      %564 = vmatpush.bf16.msra.mxu0 0
      %565 = vmatpush.bf16.msra.mxu0 0
      %566 = vmatpush.bf16.msra.mxu0 0
      %567 = vmatpush.bf16.msra.mxu0 0
      %568 = vmatpush.bf16.msra.mxu0 0
      %569 = vmatpush.bf16.msra.mxu0 0
      %570 = vmatpush.bf16.msra.mxu0 %v513
      %571 = vmatpush.bf16.msra.mxu0 %v480
      %572 = vmatmul.bf16.gmra.mxu0 %v486
      %v573 = vpop.f32.mrf.mxu0
      %v574 = vadd.f32 %v391, %v573
      %v575 = vpop.f32.mrf.mxu0
      %v576 = vadd.f32 %v393, %v575
      %577 = vmatmul.bf16.gmra.mxu0 %v489
      %v578 = vpop.f32.mrf.mxu0
      %v579 = vadd.f32 %v396, %v578
      %v580 = vpop.f32.mrf.mxu0
      %v581 = vadd.f32 %v398, %v580
      %582 = vmatmul.bf16.gmra.mxu0 %v492
      %v583 = vpop.f32.mrf.mxu0
      %v584 = vadd.f32 %v401, %v583
      %v585 = vpop.f32.mrf.mxu0
      %v586 = vadd.f32 %v403, %v585
      %587 = vmatmul.bf16.gmra.mxu0 %v495
      %v588 = vpop.f32.mrf.mxu0
      %v589 = vadd.f32 %v406, %v588
      %v590 = vpop.f32.mrf.mxu0
      %v591 = vadd.f32 %v408, %v590
      %592 = vmatmul.bf16.gmra.mxu0 %v498
      %v593 = vpop.f32.mrf.mxu0
      %v594 = vadd.f32 %v411, %v593
      %v595 = vpop.f32.mrf.mxu0
      %v596 = vadd.f32 %v413, %v595
      %597 = vmatmul.bf16.gmra.mxu0 %v501
      %v598 = vpop.f32.mrf.mxu0
      %v599 = vadd.f32 %v416, %v598
      %v600 = vpop.f32.mrf.mxu0
      %v601 = vadd.f32 %v418, %v600
      %602 = vmatmul.bf16.gmra.mxu0 %v504
      %v603 = vpop.f32.mrf.mxu0
      %v604 = vadd.f32 %v421, %v603
      %v605 = vpop.f32.mrf.mxu0
      %v606 = vadd.f32 %v423, %v605
      %607 = vmatmul.bf16.gmra.mxu0 %v507
      %v608 = vpop.f32.mrf.mxu0
      %v609 = vadd.f32 %v426, %v608
      %v610 = vpop.f32.mrf.mxu0
      %v611 = vadd.f32 %v428, %v610
      %612 = vdwg.mxu0
      %s613 = sadd.s32 %s194, 2
      %s614 = smul.u32 %s613, 8
      %s615 = sshra.s32 %s614, 3
      %s616 = sand.u32 %s614, 7
      %s617 = smul.addr %s615, 4
      %s618 = scalar_lea.vmem %s183, %s617
      %v619 = vld [vmem:[%s618] sm:$0xf]
      %v620 = vld [vmem:[%s618 + $0x4] sm:$0xf]
      %v621 = vld [vmem:[%s618 + $0x8] sm:$0xf]
      %v622 = vld [vmem:[%s618 + $0xc] sm:$0xf]
      %v623 = vld [vmem:[%s618 + $0x10] sm:$0xf]
      %v624 = vld [vmem:[%s618 + $0x14] sm:$0xf]
      %v625 = vld [vmem:[%s618 + $0x18] sm:$0xf]
      %v626 = vld [vmem:[%s618 + $0x1c] sm:$0xf]
      %v627 = vld [vmem:[%s618 + $0x20] sm:$0xf]
      %v628 = vld [vmem:[%s618 + $0x24] sm:$0xf]
      %v629 = vld [vmem:[%s618 + $0x28] sm:$0xf]
      %v630 = vld [vmem:[%s618 + $0x2c] sm:$0xf]
      %v631 = vld [vmem:[%s618 + $0x30] sm:$0xf]
      %v632 = vld [vmem:[%s618 + $0x34] sm:$0xf]
      %v633 = vld [vmem:[%s618 + $0x38] sm:$0xf]
      %v634 = vld [vmem:[%s618 + $0x3c] sm:$0xf]
      %s635 = scalar_lea.vmem %s1, 48
      %v636 = vld [vmem:[%s635] sm:$0xff]
      %v637 = vld [vmem:[%s635 + $0x8] sm:$0xff]
      %v638 = vld [vmem:[%s635 + $0x10] sm:$0x11]
      %v655 = vunpack.c.l.b16 %v619
      %v656 = vunpack.c.l.b16 %v620
      %v657 = vunpack.c.l.b16 %v621
      %v658 = vunpack.c.l.b16 %v622
      %v659 = vunpack.c.l.b16 %v623
      %v660 = vunpack.c.l.b16 %v624
      %v661 = vunpack.c.l.b16 %v625
      %v662 = vunpack.c.l.b16 %v626
      %v663 = vunpack.c.l.b16 %v627
      %v664 = vunpack.c.l.b16 %v628
      %v665 = vunpack.c.l.b16 %v629
      %v666 = vunpack.c.l.b16 %v630
      %v667 = vunpack.c.l.b16 %v631
      %v668 = vunpack.c.l.b16 %v632
      %v669 = vunpack.c.l.b16 %v633
      %v670 = vunpack.c.l.b16 %v634
      %v671 = vpack.c.b16 %v656, %v655
      %v672 = vpack.c.b16 %v658, %v657
      %v673 = vpack.c.b16 %v660, %v659
      %v674 = vpack.c.b16 %v662, %v661
      %v675 = vpack.c.b16 %v664, %v663
      %v676 = vpack.c.b16 %v666, %v665
      %v677 = vpack.c.b16 %v668, %v667
      %v678 = vpack.c.b16 %v670, %v669
      %v682 = vunpack.c.l.b16 %v636
      %v683 = vunpack.c.h.b16 %v636
      %v684 = vunpack.c.l.b16 %v637
      %v685 = vunpack.c.h.b16 %v637
      %v686 = vunpack.c.l.b16 %v638
      %v687 = vunpack.c.h.b16 %v638
      %v688 = vpack.c.b16 %v684, %v682
      %v689 = vpack.c.b16 %v685, %v683
      %v690 = vpack.c.b16 %v686, %v686
      %v691 = vpack.c.b16 %v687, %v687
      %v695 = vsel %vm300, %v671, 0
      %v698 = vsel %vm300, %v672, 0
      %v701 = vsel %vm300, %v673, 0
      %v704 = vsel %vm300, %v674, 0
      %v707 = vsel %vm300, %v675, 0
      %v710 = vsel %vm300, %v676, 0
      %v713 = vsel %vm300, %v677, 0
      %v716 = vsel %vm300, %v678, 0
      %v719 = vsel %vm325, %v690, 0
      %v722 = vsel %vm325, %v691, 0
      %724 = vmatpush.bf16.msra.mxu0 0
      %725 = vmatpush.bf16.msra.mxu0 0
      %726 = vmatpush.bf16.msra.mxu0 0
      %727 = vmatpush.bf16.msra.mxu0 0
      %728 = vmatpush.bf16.msra.mxu0 0
      %729 = vmatpush.bf16.msra.mxu0 0
      %730 = vmatpush.bf16.msra.mxu0 %v719
      %731 = vmatpush.bf16.msra.mxu0 %v688
      %732 = vmatmul.bf16.gmra.mxu0 %v695
      %v733 = vpop.f32.mrf.mxu0
      %v734 = vadd.f32 0.0, %v733
      %v735 = vpop.f32.mrf.mxu0
      %v736 = vadd.f32 0.0, %v735
      %737 = vmatmul.bf16.gmra.mxu0 %v698
      %v738 = vpop.f32.mrf.mxu0
      %v739 = vadd.f32 0.0, %v738
      %v740 = vpop.f32.mrf.mxu0
      %v741 = vadd.f32 0.0, %v740
      %742 = vmatmul.bf16.gmra.mxu0 %v701
      %v743 = vpop.f32.mrf.mxu0
      %v744 = vadd.f32 0.0, %v743
      %v745 = vpop.f32.mrf.mxu0
      %v746 = vadd.f32 0.0, %v745
      %747 = vmatmul.bf16.gmra.mxu0 %v704
      %v748 = vpop.f32.mrf.mxu0
      %v749 = vadd.f32 0.0, %v748
      %v750 = vpop.f32.mrf.mxu0
      %v751 = vadd.f32 0.0, %v750
      %752 = vmatmul.bf16.gmra.mxu0 %v707
      %v753 = vpop.f32.mrf.mxu0
      %v754 = vadd.f32 0.0, %v753
      %v755 = vpop.f32.mrf.mxu0
      %v756 = vadd.f32 0.0, %v755
      %757 = vmatmul.bf16.gmra.mxu0 %v710
      %v758 = vpop.f32.mrf.mxu0
      %v759 = vadd.f32 0.0, %v758
      %v760 = vpop.f32.mrf.mxu0
      %v761 = vadd.f32 0.0, %v760
      %762 = vmatmul.bf16.gmra.mxu0 %v713
      %v763 = vpop.f32.mrf.mxu0
      %v764 = vadd.f32 0.0, %v763
      %v765 = vpop.f32.mrf.mxu0
      %v766 = vadd.f32 0.0, %v765
      %767 = vmatmul.bf16.gmra.mxu0 %v716
      %v768 = vpop.f32.mrf.mxu0
      %v769 = vadd.f32 0.0, %v768
      %v770 = vpop.f32.mrf.mxu0
      %v771 = vadd.f32 0.0, %v770
      %772 = vdwg.mxu0
      %773 = vmatpush.bf16.msra.mxu0 0
      %774 = vmatpush.bf16.msra.mxu0 0
      %775 = vmatpush.bf16.msra.mxu0 0
      %776 = vmatpush.bf16.msra.mxu0 0
      %777 = vmatpush.bf16.msra.mxu0 0
      %778 = vmatpush.bf16.msra.mxu0 0
      %779 = vmatpush.bf16.msra.mxu0 %v722
      %780 = vmatpush.bf16.msra.mxu0 %v689
      %781 = vmatmul.bf16.gmra.mxu0 %v695
      %v782 = vpop.f32.mrf.mxu0
      %v783 = vadd.f32 0.0, %v782
      %v784 = vpop.f32.mrf.mxu0
      %v785 = vadd.f32 0.0, %v784
      %786 = vmatmul.bf16.gmra.mxu0 %v698
      %v787 = vpop.f32.mrf.mxu0
      %v788 = vadd.f32 0.0, %v787
      %v789 = vpop.f32.mrf.mxu0
      %v790 = vadd.f32 0.0, %v789
      %791 = vmatmul.bf16.gmra.mxu0 %v701
      %v792 = vpop.f32.mrf.mxu0
      %v793 = vadd.f32 0.0, %v792
      %v794 = vpop.f32.mrf.mxu0
      %v795 = vadd.f32 0.0, %v794
      %796 = vmatmul.bf16.gmra.mxu0 %v704
      %v797 = vpop.f32.mrf.mxu0
      %v798 = vadd.f32 0.0, %v797
      %v799 = vpop.f32.mrf.mxu0
      %v800 = vadd.f32 0.0, %v799
      %801 = vmatmul.bf16.gmra.mxu0 %v707
      %v802 = vpop.f32.mrf.mxu0
      %v803 = vadd.f32 0.0, %v802
      %v804 = vpop.f32.mrf.mxu0
      %v805 = vadd.f32 0.0, %v804
      %806 = vmatmul.bf16.gmra.mxu0 %v710
      %v807 = vpop.f32.mrf.mxu0
      %v808 = vadd.f32 0.0, %v807
      %v809 = vpop.f32.mrf.mxu0
      %v810 = vadd.f32 0.0, %v809
      %811 = vmatmul.bf16.gmra.mxu0 %v713
      %v812 = vpop.f32.mrf.mxu0
      %v813 = vadd.f32 0.0, %v812
      %v814 = vpop.f32.mrf.mxu0
      %v815 = vadd.f32 0.0, %v814
      %816 = vmatmul.bf16.gmra.mxu0 %v716
      %v817 = vpop.f32.mrf.mxu0
      %v818 = vadd.f32 0.0, %v817
      %v819 = vpop.f32.mrf.mxu0
      %v820 = vadd.f32 0.0, %v819
      %821 = vdwg.mxu0
      %v822 = vadd.f32 %v525, %v734
      %v823 = vadd.f32 %v574, %v783
      %v824 = vadd.f32 %v527, %v736
      %v825 = vadd.f32 %v576, %v785
      %v826 = vadd.f32 %v530, %v739
      %v827 = vadd.f32 %v579, %v788
      %v828 = vadd.f32 %v532, %v741
      %v829 = vadd.f32 %v581, %v790
      %v830 = vadd.f32 %v535, %v744
      %v831 = vadd.f32 %v584, %v793
      %v832 = vadd.f32 %v537, %v746
      %v833 = vadd.f32 %v586, %v795
      %v834 = vadd.f32 %v540, %v749
      %v835 = vadd.f32 %v589, %v798
      %v836 = vadd.f32 %v542, %v751
      %v837 = vadd.f32 %v591, %v800
      %v838 = vadd.f32 %v545, %v754
      %v839 = vadd.f32 %v594, %v803
      %v840 = vadd.f32 %v547, %v756
      %v841 = vadd.f32 %v596, %v805
      %v842 = vadd.f32 %v550, %v759
      %v843 = vadd.f32 %v599, %v808
      %v844 = vadd.f32 %v552, %v761
      %v845 = vadd.f32 %v601, %v810
      %v846 = vadd.f32 %v555, %v764
      %v847 = vadd.f32 %v604, %v813
      %v848 = vadd.f32 %v557, %v766
      %v849 = vadd.f32 %v606, %v815
      %v850 = vadd.f32 %v560, %v769
      %v851 = vadd.f32 %v609, %v818
      %v852 = vadd.f32 %v562, %v771
      %v853 = vadd.f32 %v611, %v820
      %v854 = vld [vmem:[%s2] sm:$0x3]
      %v856 = vperm.slane %v854, 0
      %v857 = vperm.slane %v854, 1
      %v860 = vadd.f32 %v822, %v856
      %v861 = vadd.f32 %v823, %v857
      %v862 = vadd.f32 %v824, %v856
      %v863 = vadd.f32 %v825, %v857
      %v864 = vadd.f32 %v826, %v856
      %v865 = vadd.f32 %v827, %v857
      %v866 = vadd.f32 %v828, %v856
      %v867 = vadd.f32 %v829, %v857
      %v868 = vadd.f32 %v830, %v856
      %v869 = vadd.f32 %v831, %v857
      %v870 = vadd.f32 %v832, %v856
      %v871 = vadd.f32 %v833, %v857
      %v872 = vadd.f32 %v834, %v856
      %v873 = vadd.f32 %v835, %v857
      %v874 = vadd.f32 %v836, %v856
      %v875 = vadd.f32 %v837, %v857
      %v876 = vadd.f32 %v838, %v856
      %v877 = vadd.f32 %v839, %v857
      %v878 = vadd.f32 %v840, %v856
      %v879 = vadd.f32 %v841, %v857
      %v880 = vadd.f32 %v842, %v856
      %v881 = vadd.f32 %v843, %v857
      %v882 = vadd.f32 %v844, %v856
      %v883 = vadd.f32 %v845, %v857
      %v884 = vadd.f32 %v846, %v856
      %v885 = vadd.f32 %v847, %v857
      %v886 = vadd.f32 %v848, %v856
      %v887 = vadd.f32 %v849, %v857
      %v888 = vadd.f32 %v850, %v856
      %v889 = vadd.f32 %v851, %v857
      %v890 = vadd.f32 %v852, %v856
      %v891 = vadd.f32 %v853, %v857
      %v892 = vmax.f32 %v860, 0.0
      %v893 = vmax.f32 %v861, 0.0
      %v894 = vmax.f32 %v862, 0.0
      %v895 = vmax.f32 %v863, 0.0
      %v896 = vmax.f32 %v864, 0.0
      %v897 = vmax.f32 %v865, 0.0
      %v898 = vmax.f32 %v866, 0.0
      %v899 = vmax.f32 %v867, 0.0
      %v900 = vmax.f32 %v868, 0.0
      %v901 = vmax.f32 %v869, 0.0
      %v902 = vmax.f32 %v870, 0.0
      %v903 = vmax.f32 %v871, 0.0
      %v904 = vmax.f32 %v872, 0.0
      %v905 = vmax.f32 %v873, 0.0
      %v906 = vmax.f32 %v874, 0.0
      %v907 = vmax.f32 %v875, 0.0
      %v908 = vmax.f32 %v876, 0.0
      %v909 = vmax.f32 %v877, 0.0
      %v910 = vmax.f32 %v878, 0.0
      %v911 = vmax.f32 %v879, 0.0
      %v912 = vmax.f32 %v880, 0.0
      %v913 = vmax.f32 %v881, 0.0
      %v914 = vmax.f32 %v882, 0.0
      %v915 = vmax.f32 %v883, 0.0
      %v916 = vmax.f32 %v884, 0.0
      %v917 = vmax.f32 %v885, 0.0
      %v918 = vmax.f32 %v886, 0.0
      %v919 = vmax.f32 %v887, 0.0
      %v920 = vmax.f32 %v888, 0.0
      %v921 = vmax.f32 %v889, 0.0
      %v922 = vmax.f32 %v890, 0.0
      %v923 = vmax.f32 %v891, 0.0
      %924 = vmatpush.msra.mxu0 %v922
      %925 = vmatpush.msra.mxu0 %v920
      %926 = vmatpush.msra.mxu0 %v918
      %927 = vmatpush.msra.mxu0 %v916
      %928 = vmatpush.msra.mxu0 %v914
      %929 = vmatpush.msra.mxu0 %v912
      %930 = vmatpush.msra.mxu0 %v910
      %931 = vmatpush.msra.mxu0 %v908
      %932 = vmatpush.msra.mxu0 %v906
      %933 = vmatpush.msra.mxu0 %v904
      %934 = vmatpush.msra.mxu0 %v902
      %935 = vmatpush.msra.mxu0 %v900
      %936 = vmatpush.msra.mxu0 %v898
      %937 = vmatpush.msra.mxu0 %v896
      %938 = vmatpush.msra.mxu0 %v894
      %939 = vmatpush.msra.mxu0 %v892
      %940 = vmatmul.f32.gmra.mxu0 1.0
      %v941 = vpop.f32.mrf.mxu0
      %v942 = vadd.f32 0.0, %v941
      %943 = vdwg.mxu0
      %944 = vmatpush.msra.mxu0 %v923
      %945 = vmatpush.msra.mxu0 %v921
      %946 = vmatpush.msra.mxu0 %v919
      %947 = vmatpush.msra.mxu0 %v917
      %948 = vmatpush.msra.mxu0 %v915
      %949 = vmatpush.msra.mxu0 %v913
      %950 = vmatpush.msra.mxu0 %v911
      %951 = vmatpush.msra.mxu0 %v909
      %952 = vmatpush.msra.mxu0 %v907
      %953 = vmatpush.msra.mxu0 %v905
      %954 = vmatpush.msra.mxu0 %v903
      %955 = vmatpush.msra.mxu0 %v901
      %956 = vmatpush.msra.mxu0 %v899
      %957 = vmatpush.msra.mxu0 %v897
      %958 = vmatpush.msra.mxu0 %v895
      %959 = vmatpush.msra.mxu0 %v893
      %960 = vmatmul.f32.gmra.mxu0 1.0
      %v961 = vpop.f32.mrf.mxu0
      %v962 = vadd.f32 0.0, %v961
      %963 = vdwg.mxu0
      %v964 = vperm.slane %v942, 0
      %v965 = vperm.slane %v962, 0
      %966 = vst [vmem:[%s192] sm:$0xff] %v964
      %967 = vst [vmem:[%s192 + $0x8] sm:$0xff] %v965
      %p968 = scmp.lt.s32.totalorder %s18, 1
      %s969 = scalar_select %p968, %s18, 1
      %p970 = scmp.lt.s32.totalorder %s19, 0
      %s971 = scalar_select %p970, %s19, 0
      %s972 = smul.addr %s971, 2
      %s973 = smul.addr %s969, 2
      %s974 = sadd.s32 %s972, %s973
      %s975 = smul.addr %s974, 8
      %s976 = scalar_lea.vmem %s3, %s975
      // Predicated region
      $region33: #{scene_classifier_forward.1} parent=31 // pred_check
        %p977 = pneg %p114
      $region34: #{scene_classifier_forward.1} parent=31 // pred_check_branch
        %979 = sbr.rel (%p977) target = $region36
      $region35: #{scene_classifier_forward.1} parent=31 // pred_region
        _
      $region36: #{scene_classifier_forward.1} parent=31 // pred_fallthru
        _
    $region32: #{scene_classifier_forward.1} parent=5 // pred_fallthru
      _
    %p980 = scmp.le.s32.totalorder 2, %s9
    // Predicated region
    $region37: #{scene_classifier_forward.1} parent=5 // pred_check
      %p981 = pneg %p980
    $region38: #{scene_classifier_forward.1} parent=5 // pred_check_branch
      %983 = sbr.rel (%p981) target = $region40
    $region39: #{scene_classifier_forward.1} parent=5 // pred_region
      %s984 = ssub.s32 %s9, 2
      // Predicated region
      $region41: #{scene_classifier_forward.1} parent=39 // pred_check
        %p985 = pneg %p120
      $region42: #{scene_classifier_forward.1} parent=39 // pred_check_branch
        %987 = sbr.rel (%p985) target = $region44
      $region43: #{scene_classifier_forward.1} parent=39 // pred_region
        %p988 = scmp.lt.s32.totalorder %s20, 1
        %s989 = scalar_select %p988, %s20, 1
        %p990 = scmp.lt.s32.totalorder %s21, 0
        %s991 = scalar_select %p990, %s21, 0
        %s992 = smul.addr %s991, 2
        %s993 = smul.addr %s989, 2
        %s994 = sadd.s32 %s992, %s993
        %s995 = smul.addr %s994, 8
        %s996 = scalar_lea.vmem %s3, %s995
      $region44: #{scene_classifier_forward.1} parent=39 // pred_fallthru
        _
    $region40: #{scene_classifier_forward.1} parent=5 // pred_fallthru
      _
  $region6: #{scene_classifier_forward.1} parent=0 // loop_footer
    %s13 = sadd.s32 1, %s9
  $region7: #{scene_classifier_forward.1} parent=0 // loop_footer_branch
    %8 = sbr.rel target = $region3
  $region8: #{scene_classifier_forward.1} parent=0 // loop_exit
    _

</llo_original>
